<compile_context>
chip_gen: v6e
topology: v6e:2x2x1
jax: 0.10.0
libtpu: 0.0.40
codegen_flags: <defaults>
</compile_context>

<pallas_src>
import jax
import jax.numpy as jnp
from jax.experimental import pallas as pl
from jax.experimental.pallas import tpu as pltpu

IN_F = 4
OUT_F = 3


def _small_linear_kernel(x_ref, wt_ref, b_ref, o_ref):
    # Whole problem resident in VMEM (single invocation, no grid).
    # x: (B, in_f), wt: (in_f, out_f) (pre-transposed in wrapper), b: (1, out_f)
    acc = jnp.dot(x_ref[...], wt_ref[...], preferred_element_type=jnp.float32)
    o_ref[...] = (acc + b_ref[...]).astype(o_ref.dtype)


def _packed_linear_kernel(x_ref, w_ref, b_ref, o_ref):
    # x: (TR, pack*in_f), w: (pack*in_f, pack*out_f) block-diagonal,
    # b: (1, pack*out_f), o: (TR, pack*out_f).  One dense lane-aligned matmul.
    acc = jnp.dot(x_ref[...], w_ref[...], preferred_element_type=jnp.float32)
    o_ref[...] = (acc + b_ref[...]).astype(o_ref.dtype)


def softmax_regression_forward(x, weight, bias, *, small_b_threshold=1024,
                               target_tile_bytes=2 * 1024 * 1024):
    """x: (B, 4), weight: (3, 4) [PyTorch layout], bias: (3,) -> (B, 3)."""
    B, in_f = x.shape
    out_f = weight.shape[0]
    dtype = x.dtype

    # ---- Tiny batch: pure-overhead regime; one dispatch, no grid, no transpose.
    if B <= small_b_threshold:
        return pl.pallas_call(
            _small_linear_kernel,
            out_shape=jax.ShapeDtypeStruct((B, out_f), dtype),
            in_specs=[
                pl.BlockSpec(memory_space=pltpu.MemorySpace.VMEM),
                pl.BlockSpec(memory_space=pltpu.MemorySpace.VMEM),
                pl.BlockSpec(memory_space=pltpu.MemorySpace.VMEM),
            ],
            out_specs=pl.BlockSpec(memory_space=pltpu.MemorySpace.VMEM),
        )(x, weight.T, bias.reshape(1, out_f))

    # ---- Large batch: packed lane-dense formulation.
    if B % 128 == 0:
        pack, pad = 128, 0                 # 512-wide input rows, 384-wide output rows
    elif B % 32 == 0:
        pack, pad = 32, 0                  # 128-wide input rows, 96-wide output rows
    else:
        pack = 32
        pad = (-B) % 32                    # pad a few rows; sliced off at the end
    if pad:
        x = jnp.pad(x, ((0, pad), (0, 0)))
    Bp = B + pad

    rows = Bp // pack                      # packed rows
    kdim = pack * in_f                     # lanes per packed input row
    ndim = pack * out_f                    # lanes per packed output row

    # Block-diagonal weight (pack copies of W^T on the diagonal) + tiled bias,
    # built once in the wrapper (hoisted/constant-folded under jit).
    w_big = jnp.kron(jnp.eye(pack, dtype=weight.dtype), weight.T)   # (kdim, ndim)
    b_big = jnp.tile(bias, pack).reshape(1, ndim)                   # (1, ndim)

    x_packed = x.reshape(rows, kdim)       # zero-copy row-major reshape

    # Row-tile size: ~target_tile_bytes of x per step (amortizes per-step
    # overhead), but keep >= 2 grid steps so v7x's two TensorCores both work,
    # and keep the sublane dim a multiple of 8.
    bytes_per_row = kdim * x.dtype.itemsize
    rows_per_tile = max(8, target_tile_bytes // bytes_per_row)
    rows_per_tile = min(rows_per_tile, pl.cdiv(rows, 2))
    rows_per_tile = max(8, (rows_per_tile // 8) * 8)
    nb = pl.cdiv(rows, rows_per_tile)      # partial last tile is safe: the
                                           # contraction is fully in-bounds and
                                           # OOB output rows are masked.

    out_packed = pl.pallas_call(
        _packed_linear_kernel,
        out_shape=jax.ShapeDtypeStruct((rows, ndim), dtype),
        grid=(nb,),
        in_specs=[
            pl.BlockSpec((rows_per_tile, kdim), lambda i: (i, 0)),
            pl.BlockSpec((kdim, ndim), lambda i: (0, 0)),
            pl.BlockSpec((1, ndim), lambda i: (0, 0)),
        ],
        out_specs=pl.BlockSpec((rows_per_tile, ndim), lambda i: (i, 0)),
        compiler_params=pltpu.CompilerParams(
            dimension_semantics=("parallel",),
            vmem_limit_bytes=32 * 1024 * 1024,   # safe on v5e/v6e/v7x; tiles fit easily
        ),
    )(x_packed, w_big, b_big)

    out = out_packed.reshape(Bp, out_f)    # zero-copy back to (Bp, 3)
    if pad:
        out = out[:B]
    return out


if __name__ == "__main__":
    key = jax.random.PRNGKey(0)
    kx, kw, kb, kx2, kx3 = jax.random.split(key, 5)

    B, IN, OUT = 8, IN_F, OUT_F
    # nn.Linear(4, 3)-style init: uniform(-1/sqrt(in_f), 1/sqrt(in_f))
    bound = 1.0 / (IN ** 0.5)
    weight = jax.random.uniform(kw, (OUT, IN), jnp.float32, -bound, bound)
    bias = jax.random.uniform(kb, (OUT,), jnp.float32, -bound, bound)

    # 1) Small batch (no-grid, direct (B, 3) output).
    x = jax.random.normal(kx, (B, IN), dtype=jnp.float32)
    out = jax.block_until_ready(softmax_regression_forward(x, weight, bias))
    ref = x @ weight.T + bias
    assert out.shape == (B, OUT)
    assert jnp.allclose(out, ref, atol=1e-5, rtol=1e-5)

    # 2) Large batch, B % 128 == 0 -> pack=128, fully lane-dense, 2+ parallel steps.
    B2 = 4096
    x2 = jax.random.normal(kx2, (B2, IN), dtype=jnp.float32)
    out2 = jax.block_until_ready(softmax_regression_forward(x2, weight, bias))
    ref2 = x2 @ weight.T + bias
    assert out2.shape == (B2, OUT)
    assert jnp.allclose(out2, ref2, atol=1e-5, rtol=1e-5)

    # 3) Large batch, B not a multiple of 32 -> pad path + partial last tile.
    B3 = 2050
    x3 = jax.random.normal(kx3, (B3, IN), dtype=jnp.float32)
    out3 = jax.block_until_ready(softmax_regression_forward(x3, weight, bias))
    ref3 = x3 @ weight.T + bias
    assert out3.shape == (B3, OUT)
    assert jnp.allclose(out3, ref3, atol=1e-5, rtol=1e-5)

    print("KERNEL_OK")
</pallas_src>

<mosaic_0001>
module attributes {stable_mosaic.version = 11 : i64} {
  func.func @_small_linear_kernel(%arg0: memref<8x4xf32, #tpu.memory_space<vmem>>, %arg1: memref<4x3xf32, #tpu.memory_space<vmem>>, %arg2: memref<1x3xf32, #tpu.memory_space<vmem>>, %arg3: memref<8x3xf32, #tpu.memory_space<vmem>>) attributes {dimension_semantics = [], scalar_prefetch = 0 : i64, scratch_operands = 0 : i64, tpu.core_type = #tpu.core_type<tc>} {
    %c0 = arith.constant 0 : index
    %c0_0 = arith.constant 0 : index
    %0 = vector.load %arg0[%c0, %c0_0] : memref<8x4xf32, #tpu.memory_space<vmem>>, vector<8x4xf32>
    %c0_1 = arith.constant 0 : index
    %c0_2 = arith.constant 0 : index
    %1 = vector.load %arg1[%c0_1, %c0_2] : memref<4x3xf32, #tpu.memory_space<vmem>>, vector<4x3xf32>
    %cst = arith.constant dense<0.000000e+00> : vector<8x3xf32>
    %2 = tpu.matmul %0, %1, %cst {dimension_numbers = #tpu.dot_dimension_numbers<[1], [0], [0], [1], [0, 0, 1, 1], [], []>} : vector<8x4xf32>, vector<4x3xf32>, vector<8x3xf32> -> vector<8x3xf32>
    %c0_3 = arith.constant 0 : index
    %c0_4 = arith.constant 0 : index
    %3 = vector.load %arg2[%c0_3, %c0_4] : memref<1x3xf32, #tpu.memory_space<vmem>>, vector<1x3xf32>
    %4 = vector.broadcast %3 : vector<1x3xf32> to vector<8x3xf32>
    %5 = arith.addf %2, %4 : vector<8x3xf32>
    %c0_5 = arith.constant 0 : index
    %c0_6 = arith.constant 0 : index
    %6 = vector.load %arg3[%c0_5, %c0_6] : memref<8x3xf32, #tpu.memory_space<vmem>>, vector<8x3xf32>
    tpu.vector_store %arg3[%c0_5, %c0_6], %5 {strides = array<i32>} : memref<8x3xf32, #tpu.memory_space<vmem>>, vector<8x3xf32>,
    return
  }
}

</mosaic_0001>

<llo_original>
// kernel: tpu_custom_call.1
$region0: #{tpu_custom_call.1}
  #allocation0 [shape = 'u32[]', space=smem, size = 0x4, offset = 0x4, fixed_abs, tag = 'smem constant byte address 0x4 - core index']
  #allocation1 [shape = 'u32[144,128]{1,0:T(1,128)}', space=vmem, size = 0x12000, scoped, tag = 'internal scratch']
  %s0 = inlined_call_operand.vmem [shape: f32[8,4], index: 0, kind: input, shape index: {}]
  %s1 = inlined_call_operand.vmem [shape: f32[4,3], index: 1, kind: input, shape index: {}]
  %s2 = inlined_call_operand.vmem [shape: f32[1,3], index: 2, kind: input, shape index: {}]
  %s3 = inlined_call_operand.vmem [shape: f32[8,3], index: 3, kind: output, shape index: {}]
  %s4 = sld [smem:[#allocation0]]
  $region22: #{tpu_custom_call.1} parent=0
    _
  %s6 = ssub.s32 1, %s4
  %s7 = scalar_select 0, %s6, %s4
  // Predicated region
  $region2: #{tpu_custom_call.1} parent=0 // pred_check
    _
  $region3: #{tpu_custom_call.1} parent=0 // pred_check_branch
    %9 = sbr.rel (0) target = $region5
  $region4: #{tpu_custom_call.1} parent=0 // pred_region
    _
  $region5: #{tpu_custom_call.1} parent=0 // pred_fallthru
    _
  // Predicated region
  $region6: #{tpu_custom_call.1} parent=0 // pred_check
    _
  $region7: #{tpu_custom_call.1} parent=0 // pred_check_branch
    %11 = sbr.rel (0) target = $region9
  $region8: #{tpu_custom_call.1} parent=0 // pred_region
    _
  $region9: #{tpu_custom_call.1} parent=0 // pred_fallthru
    _
  // Predicated region
  $region10: #{tpu_custom_call.1} parent=0 // pred_check
    _
  $region11: #{tpu_custom_call.1} parent=0 // pred_check_branch
    %13 = sbr.rel (0) target = $region13
  $region12: #{tpu_custom_call.1} parent=0 // pred_region
    _
  $region13: #{tpu_custom_call.1} parent=0 // pred_fallthru
    _
  %v14 = vld [vmem:[%s0] sm:$0xff]
  %v15 = vld [vmem:[%s1] sm:$0xf]
  %v16 = vld [vmem:[%s2] sm:$0x1]
  %v18 = vlaneseq
  %v19 = vshrl.u32 %v18, 7
  %v20 = vsub.s32 0, %v19
  %v21 = vrot.slane %v16, %v20
  %vm23 = vcmask 31744
  %v25 = vsel %vm23, %v14, 0
  %vm27 = vcmask 1043456
  %v29 = vsel %vm27, %v15, 0
  %31 = vmatprep.subr.mxu0 0.0
  %32 = vmatpush1.msra.mxu0 0.0
  %33 = vmatprep.subr.mxu0 0.0
  %34 = vmatpush1.msra.mxu0 0.0
  %35 = vmatprep.subr.mxu0 0.0
  %36 = vmatpush1.msra.mxu0 0.0
  %37 = vmatprep.subr.mxu0 0.0
  %38 = vmatpush1.msra.mxu0 0.0
  %39 = vmatprep.subr.mxu0 0.0
  %40 = vmatpush1.msra.mxu0 0.0
  %41 = vmatprep.subr.mxu0 0.0
  %42 = vmatpush1.msra.mxu0 0.0
  %43 = vmatprep.subr.mxu0 0.0
  %44 = vmatpush1.msra.mxu0 0.0
  %45 = vmatprep.subr.mxu0 0.0
  %46 = vmatpush1.msra.mxu0 0.0
  %47 = vmatprep.subr.mxu0 0.0
  %48 = vmatpush1.msra.mxu0 0.0
  %49 = vmatprep.subr.mxu0 0.0
  %50 = vmatpush1.msra.mxu0 0.0
  %51 = vmatprep.subr.mxu0 0.0
  %52 = vmatpush1.msra.mxu0 0.0
  %53 = vmatprep.subr.mxu0 0.0
  %54 = vmatpush1.msra.mxu0 0.0
  %55 = vmatprep.subr.mxu0 0.0
  %56 = vmatpush1.msra.mxu0 0.0
  %57 = vmatprep.subr.mxu0 0.0
  %58 = vmatpush1.msra.mxu0 0.0
  %59 = vmatprep.subr.mxu0 0.0
  %60 = vmatpush1.msra.mxu0 0.0
  %61 = vmatprep.subr.mxu0 0.0
  %62 = vmatpush1.msra.mxu0 %v29
  %63 = vmatprep.subr.mxu0 0.0
  %64 = vmatpush2.msra.mxu0 0.0
  %65 = vmatprep.subr.mxu0 0.0
  %66 = vmatpush2.msra.mxu0 0.0
  %67 = vmatprep.subr.mxu0 0.0
  %68 = vmatpush2.msra.mxu0 0.0
  %69 = vmatprep.subr.mxu0 0.0
  %70 = vmatpush2.msra.mxu0 0.0
  %71 = vmatprep.subr.mxu0 0.0
  %72 = vmatpush2.msra.mxu0 0.0
  %73 = vmatprep.subr.mxu0 0.0
  %74 = vmatpush2.msra.mxu0 0.0
  %75 = vmatprep.subr.mxu0 0.0
  %76 = vmatpush2.msra.mxu0 0.0
  %77 = vmatprep.subr.mxu0 0.0
  %78 = vmatpush2.msra.mxu0 0.0
  %79 = vmatprep.subr.mxu0 0.0
  %80 = vmatpush2.msra.mxu0 0.0
  %81 = vmatprep.subr.mxu0 0.0
  %82 = vmatpush2.msra.mxu0 0.0
  %83 = vmatprep.subr.mxu0 0.0
  %84 = vmatpush2.msra.mxu0 0.0
  %85 = vmatprep.subr.mxu0 0.0
  %86 = vmatpush2.msra.mxu0 0.0
  %87 = vmatprep.subr.mxu0 0.0
  %88 = vmatpush2.msra.mxu0 0.0
  %89 = vmatprep.subr.mxu0 0.0
  %90 = vmatpush2.msra.mxu0 0.0
  %91 = vmatprep.subr.mxu0 0.0
  %92 = vmatpush2.msra.mxu0 0.0
  %93 = vmatprep.subr.mxu0 0.0
  %94 = vmatpush2.msra.mxu0 0.0
  %95 = vmatprep.mubr.f32.mxu0 0.0
  %96 = vmatmul.mubr.f32.gmra.mxu0 %v25
  %v97 = vpop.f32.mrf.mxu0
  %v98 = vadd.f32 %v21, %v97
  %v99 = vpop.f32.mrf.mxu0
  %100 = vdwg.mxu0
  %vm101 = vcmask 23552
  %102 = vst.msk [vmem:[%s3] sm:$0xff] %vm101, %v98
  // Predicated region
  $region14: #{tpu_custom_call.1} parent=0 // pred_check
    _
  $region15: #{tpu_custom_call.1} parent=0 // pred_check_branch
    %104 = sbr.rel (0) target = $region17
  $region16: #{tpu_custom_call.1} parent=0 // pred_region
    _
  $region17: #{tpu_custom_call.1} parent=0 // pred_fallthru
    _
  // Predicated region
  $region18: #{tpu_custom_call.1} parent=0 // pred_check
    _
  $region19: #{tpu_custom_call.1} parent=0 // pred_check_branch
    %106 = sbr.rel (0) target = $region21
  $region20: #{tpu_custom_call.1} parent=0 // pred_region
    _
  $region21: #{tpu_custom_call.1} parent=0 // pred_fallthru
    _

</llo_original>
